<compile_context>
chip_gen: v7x
topology: tpu7x:2x2x1
jax: 0.10.0
libtpu: 0.0.40
codegen_flags: <defaults>
</compile_context>

<pallas_src>
import functools

import jax
import jax.numpy as jnp
from jax.experimental import pallas as pl
from jax.experimental.pallas import tpu as pltpu


def _round_up(x, m):
    return ((x + m - 1) // m) * m


def _generator_kernel(z_ref, w1_ref, b1_ref, w2_ref, b2_ref, w3_ref, b3_ref,
                      out_ref, *, compute_dtype):
    # z_ref   : (bm, noise_dim) f32   -- streamed, narrow
    # w1_ref  : (noise_dim, 64)       -- resident, compute_dtype
    # b1_ref  : (1, 64)               -- resident, f32
    # w2_ref  : (64, 128)             -- resident, compute_dtype
    # b2_ref  : (1, 128)              -- resident, f32
    # w3_ref  : (128, out_dim)        -- resident, compute_dtype
    # b3_ref  : (1, out_dim)          -- resident, f32
    # out_ref : (bm, out_dim) f32     -- streamed, narrow
    z = z_ref[...].astype(compute_dtype)          # cast in VMEM, not in HBM

    # Layer 1: Linear -> ReLU (MXU matmul with f32 accumulation).
    h = jnp.dot(z, w1_ref[...], preferred_element_type=jnp.float32)
    h = jnp.maximum(h + b1_ref[...], 0.0)

    # Layer 2: Linear -> ReLU.
    h = jnp.dot(h.astype(compute_dtype), w2_ref[...],
                preferred_element_type=jnp.float32)
    h = jnp.maximum(h + b2_ref[...], 0.0)

    # Layer 3: Linear -> Tanh (tanh goes to the EUP; its slot is idle here).
    h = jnp.dot(h.astype(compute_dtype), w3_ref[...],
                preferred_element_type=jnp.float32)
    out_ref[...] = jnp.tanh(h + b3_ref[...]).astype(out_ref.dtype)


def prepare_params(params, *, use_bf16=True):
    """One-time parameter prep (hoisted off the per-call forward path).

    Weights are cast to the MXU compute dtype; biases stay f32 (bias add,
    ReLU and tanh are done in f32 -- safe on v5e which has no bf16 VPU/EUP).
    """
    wd = jnp.bfloat16 if use_bf16 else jnp.float32
    return {
        "w1": params["w1"].astype(wd), "b1": params["b1"].astype(jnp.float32),
        "w2": params["w2"].astype(wd), "b2": params["b2"].astype(jnp.float32),
        "w3": params["w3"].astype(wd), "b3": params["b3"].astype(jnp.float32),
    }


def generator_forward(z, params, *, bm=2048):
    """Forward pass of the Generator MLP.

    z: [B, noise_dim] float32.
    params: output of prepare_params(); w{1,2,3} of shape [in, out] and
            b{1,2,3} of shape [1, out] (y = x @ W + b, i.e. PyTorch's
            x @ W_pt.T + b).
    bm: batch tile (rows per grid step); 2048-4096 amortizes the per-step
        overhead well, clamped down for small batches.
    """
    B, noise_dim = z.shape
    h1 = params["w1"].shape[1]
    h2 = params["w2"].shape[1]
    out_dim = params["w3"].shape[1]
    compute_dtype = params["w1"].dtype

    # Batch tiling: clamp the tile to the (sublane-aligned) batch; if the
    # whole batch fits in one tile, split it so the grid has >= 2 steps and
    # both v7x TensorCores get work.
    B8 = _round_up(B, 8)
    bm_eff = max(8, min(_round_up(bm, 8), B8))
    if bm_eff == B8 and B8 >= 16:
        bm_eff = _round_up(B8 // 2, 8)
    B_pad = _round_up(B, bm_eff)
    grid = (B_pad // bm_eff,)

    # Only the batch (row) dim is padded; padded rows are sliced off below.
    if B_pad != B:
        z = jnp.pad(z, ((0, B_pad - B), (0, 0)))

    in_specs = [
        pl.BlockSpec((bm_eff, noise_dim), lambda i: (i, 0)),   # z: streamed
        pl.BlockSpec((noise_dim, h1), lambda i: (0, 0)),       # w1: resident
        pl.BlockSpec((1, h1), lambda i: (0, 0)),               # b1: resident
        pl.BlockSpec((h1, h2), lambda i: (0, 0)),              # w2: resident
        pl.BlockSpec((1, h2), lambda i: (0, 0)),               # b2: resident
        pl.BlockSpec((h2, out_dim), lambda i: (0, 0)),         # w3: resident
        pl.BlockSpec((1, out_dim), lambda i: (0, 0)),          # b3: resident
    ]
    out_spec = pl.BlockSpec((bm_eff, out_dim), lambda i: (i, 0))

    wbytes = compute_dtype.dtype.itemsize if hasattr(compute_dtype, "dtype") \
        else jnp.dtype(compute_dtype).itemsize
    cost = pl.CostEstimate(
        flops=2 * B_pad * (noise_dim * h1 + h1 * h2 + h2 * out_dim),
        transcendentals=B_pad * out_dim,
        bytes_accessed=(B_pad * noise_dim * 4 + B_pad * out_dim * 4
                        + (noise_dim * h1 + h1 * h2 + h2 * out_dim) * wbytes
                        + (h1 + h2 + out_dim) * 4),
    )

    out = pl.pallas_call(
        functools.partial(_generator_kernel, compute_dtype=compute_dtype),
        out_shape=jax.ShapeDtypeStruct((B_pad, out_dim), jnp.float32),
        grid_spec=pltpu.PrefetchScalarGridSpec(
            num_scalar_prefetch=0,
            grid=grid,
            in_specs=in_specs,
            out_specs=out_spec,
        ),
        compiler_params=pltpu.CompilerParams(
            dimension_semantics=("parallel",)),
        cost_estimate=cost,
    )(z, params["w1"], params["b1"], params["w2"], params["b2"],
      params["w3"], params["b3"])

    return out[:B] if B_pad != B else out


def init_params(key, noise_dim, output_dim):
    """Deterministic init matching PyTorch nn.Linear's U(-1/sqrt(fan_in), .)
    scheme (synthetic weights, not a checkpoint)."""
    dims = [(noise_dim, 64), (64, 128), (128, output_dim)]
    params = {}
    keys = jax.random.split(key, 2 * len(dims))
    for idx, (fan_in, fan_out) in enumerate(dims):
        bound = 1.0 / jnp.sqrt(jnp.float32(fan_in))
        params[f"w{idx + 1}"] = jax.random.uniform(
            keys[2 * idx], (fan_in, fan_out), jnp.float32, -bound, bound)
        params[f"b{idx + 1}"] = jax.random.uniform(
            keys[2 * idx + 1], (1, fan_out), jnp.float32, -bound, bound)
    return params


def reference_forward(z, p):
    h = jnp.maximum(z @ p["w1"] + p["b1"], 0.0)
    h = jnp.maximum(h @ p["w2"] + p["b2"], 0.0)
    return jnp.tanh(h @ p["w3"] + p["b3"])


if __name__ == "__main__":
    noise_dim = 32
    output_dim = 16

    key = jax.random.PRNGKey(0)
    k_p, k_z1, k_z2 = jax.random.split(key, 3)
    raw = init_params(k_p, noise_dim, output_dim)

    # --- small batch, f32 weights: exact check against the pure-JAX ref ---
    p_f32 = prepare_params(raw, use_bf16=False)
    z1 = jax.random.normal(k_z1, (8, noise_dim), jnp.float32)
    out_f32 = jax.block_until_ready(generator_forward(z1, p_f32, bm=1024))
    ref1 = reference_forward(z1, raw)
    assert out_f32.shape == (8, output_dim)
    assert jnp.allclose(out_f32, ref1, atol=1e-5, rtol=1e-5)

    # --- multi-tile bf16 path with a padded tail (bm does not divide B) ---
    p_bf16 = prepare_params(raw, use_bf16=True)
    z2 = jax.random.normal(k_z2, (300, noise_dim), jnp.float32)
    out_bf16 = jax.block_until_ready(generator_forward(z2, p_bf16, bm=128))
    ref2 = reference_forward(z2, raw)
    assert out_bf16.shape == (300, output_dim)
    assert jnp.allclose(out_bf16, ref2, atol=5e-2, rtol=5e-2)

    print("KERNEL_OK")
</pallas_src>

<mosaic_0001>
module attributes {stable_mosaic.version = 11 : i64} {
  func.func @_generator_kernel(%arg0: i32, %arg1: memref<8x32xf32, #tpu.memory_space<vmem>>, %arg2: memref<32x64xf32, #tpu.memory_space<vmem>>, %arg3: memref<1x64xf32, #tpu.memory_space<vmem>>, %arg4: memref<64x128xf32, #tpu.memory_space<vmem>>, %arg5: memref<1x128xf32, #tpu.memory_space<vmem>>, %arg6: memref<128x16xf32, #tpu.memory_space<vmem>>, %arg7: memref<1x16xf32, #tpu.memory_space<vmem>>, %arg8: memref<8x16xf32, #tpu.memory_space<vmem>>) attributes {dimension_semantics = [#tpu.dimension_semantics<parallel>], iteration_bounds = array<i64: 1>, scalar_prefetch = 0 : i64, scratch_operands = 0 : i64, tpu.core_type = #tpu.core_type<tc>, window_params = [{transform_indices = @transform_0, window_bounds = array<i64: 8, 32>}, {pipeline_mode = #tpu.pipeline_mode<synchronous>, transform_indices = @transform_1, window_bounds = array<i64: 32, 64>}, {pipeline_mode = #tpu.pipeline_mode<synchronous>, transform_indices = @transform_2, window_bounds = array<i64: 1, 64>}, {pipeline_mode = #tpu.pipeline_mode<synchronous>, transform_indices = @transform_3, window_bounds = array<i64: 64, 128>}, {pipeline_mode = #tpu.pipeline_mode<synchronous>, transform_indices = @transform_4, window_bounds = array<i64: 1, 128>}, {pipeline_mode = #tpu.pipeline_mode<synchronous>, transform_indices = @transform_5, window_bounds = array<i64: 128, 16>}, {pipeline_mode = #tpu.pipeline_mode<synchronous>, transform_indices = @transform_6, window_bounds = array<i64: 1, 16>}, {transform_indices = @transform_7, window_bounds = array<i64: 8, 16>}]} {
    %c0 = arith.constant 0 : index
    %c0_0 = arith.constant 0 : index
    %0 = vector.load %arg1[%c0, %c0_0] : memref<8x32xf32, #tpu.memory_space<vmem>>, vector<8x32xf32>
    %c0_1 = arith.constant 0 : index
    %c0_2 = arith.constant 0 : index
    %1 = vector.load %arg2[%c0_1, %c0_2] : memref<32x64xf32, #tpu.memory_space<vmem>>, vector<32x64xf32>
    %cst = arith.constant dense<0.000000e+00> : vector<8x64xf32>
    %2 = tpu.matmul %0, %1, %cst {dimension_numbers = #tpu.dot_dimension_numbers<[1], [0], [0], [1], [0, 0, 1, 1], [], []>} : vector<8x32xf32>, vector<32x64xf32>, vector<8x64xf32> -> vector<8x64xf32>
    %c0_3 = arith.constant 0 : index
    %c0_4 = arith.constant 0 : index
    %3 = vector.load %arg3[%c0_3, %c0_4] : memref<1x64xf32, #tpu.memory_space<vmem>>, vector<1x64xf32>
    %4 = vector.broadcast %3 : vector<1x64xf32> to vector<8x64xf32>
    %5 = arith.addf %2, %4 : vector<8x64xf32>
    %cst_5 = arith.constant 0.000000e+00 : f32
    %6 = vector.broadcast %cst_5 : f32 to vector<8x64xf32>
    %7 = arith.maximumf %5, %6 : vector<8x64xf32>
    %c0_6 = arith.constant 0 : index
    %c0_7 = arith.constant 0 : index
    %8 = vector.load %arg4[%c0_6, %c0_7] : memref<64x128xf32, #tpu.memory_space<vmem>>, vector<64x128xf32>
    %cst_8 = arith.constant dense<0.000000e+00> : vector<8x128xf32>
    %9 = tpu.matmul %7, %8, %cst_8 {dimension_numbers = #tpu.dot_dimension_numbers<[1], [0], [0], [1], [0, 0, 1, 1], [], []>} : vector<8x64xf32>, vector<64x128xf32>, vector<8x128xf32> -> vector<8x128xf32>
    %c0_9 = arith.constant 0 : index
    %c0_10 = arith.constant 0 : index
    %10 = vector.load %arg5[%c0_9, %c0_10] : memref<1x128xf32, #tpu.memory_space<vmem>>, vector<1x128xf32>
    %11 = vector.broadcast %10 : vector<1x128xf32> to vector<8x128xf32>
    %12 = arith.addf %9, %11 : vector<8x128xf32>
    %cst_11 = arith.constant 0.000000e+00 : f32
    %13 = vector.broadcast %cst_11 : f32 to vector<8x128xf32>
    %14 = arith.maximumf %12, %13 : vector<8x128xf32>
    %c0_12 = arith.constant 0 : index
    %c0_13 = arith.constant 0 : index
    %15 = vector.load %arg6[%c0_12, %c0_13] : memref<128x16xf32, #tpu.memory_space<vmem>>, vector<128x16xf32>
    %cst_14 = arith.constant dense<0.000000e+00> : vector<8x16xf32>
    %16 = tpu.matmul %14, %15, %cst_14 {dimension_numbers = #tpu.dot_dimension_numbers<[1], [0], [0], [1], [0, 0, 1, 1], [], []>} : vector<8x128xf32>, vector<128x16xf32>, vector<8x16xf32> -> vector<8x16xf32>
    %c0_15 = arith.constant 0 : index
    %c0_16 = arith.constant 0 : index
    %17 = vector.load %arg7[%c0_15, %c0_16] : memref<1x16xf32, #tpu.memory_space<vmem>>, vector<1x16xf32>
    %18 = vector.broadcast %17 : vector<1x16xf32> to vector<8x16xf32>
    %19 = arith.addf %16, %18 : vector<8x16xf32>
    %20 = math.tanh %19 : vector<8x16xf32>
    %c0_17 = arith.constant 0 : index
    %c0_18 = arith.constant 0 : index
    %21 = vector.load %arg8[%c0_17, %c0_18] : memref<8x16xf32, #tpu.memory_space<vmem>>, vector<8x16xf32>
    tpu.vector_store %arg8[%c0_17, %c0_18], %20 {strides = array<i32>} : memref<8x16xf32, #tpu.memory_space<vmem>>, vector<8x16xf32>,
    return
  }
  func.func @transform_0(%arg0: i32) -> (i32, i32) {
    %c0_i32 = arith.constant 0 : i32
    %c0_i32_0 = arith.constant 0 : i32
    return %arg0, %c0_i32 : i32, i32
  }
  func.func @transform_1(%arg0: i32) -> (i32, i32) {
    %c0_i32 = arith.constant 0 : i32
    %c0_i32_0 = arith.constant 0 : i32
    %c0_i32_1 = arith.constant 0 : i32
    return %c0_i32, %c0_i32_0 : i32, i32
  }
  func.func @transform_2(%arg0: i32) -> (i32, i32) {
    %c0_i32 = arith.constant 0 : i32
    %c0_i32_0 = arith.constant 0 : i32
    %c0_i32_1 = arith.constant 0 : i32
    return %c0_i32, %c0_i32_0 : i32, i32
  }
  func.func @transform_3(%arg0: i32) -> (i32, i32) {
    %c0_i32 = arith.constant 0 : i32
    %c0_i32_0 = arith.constant 0 : i32
    %c0_i32_1 = arith.constant 0 : i32
    return %c0_i32, %c0_i32_0 : i32, i32
  }
  func.func @transform_4(%arg0: i32) -> (i32, i32) {
    %c0_i32 = arith.constant 0 : i32
    %c0_i32_0 = arith.constant 0 : i32
    %c0_i32_1 = arith.constant 0 : i32
    return %c0_i32, %c0_i32_0 : i32, i32
  }
  func.func @transform_5(%arg0: i32) -> (i32, i32) {
    %c0_i32 = arith.constant 0 : i32
    %c0_i32_0 = arith.constant 0 : i32
    %c0_i32_1 = arith.constant 0 : i32
    return %c0_i32, %c0_i32_0 : i32, i32
  }
  func.func @transform_6(%arg0: i32) -> (i32, i32) {
    %c0_i32 = arith.constant 0 : i32
    %c0_i32_0 = arith.constant 0 : i32
    %c0_i32_1 = arith.constant 0 : i32
    return %c0_i32, %c0_i32_0 : i32, i32
  }
  func.func @transform_7(%arg0: i32) -> (i32, i32) {
    %c0_i32 = arith.constant 0 : i32
    %c0_i32_0 = arith.constant 0 : i32
    return %arg0, %c0_i32 : i32, i32
  }
}

</mosaic_0001>

<llo_original>
// kernel: tpu_custom_call.1
$region0: #{tpu_custom_call.1}
  #allocation0 [shape = 'u32[]', space=smem, size = 0x4, offset = 0x4, fixed_abs, tag = 'smem constant byte address 0x4 - core index']
  #allocation1 [shape = 'u32[144,128]{1,0:T(1,128)}', space=vmem, size = 0x12000, scoped, tag = 'internal scratch']
  %s0 = inlined_call_operand.vmem [shape: f32[8,32], index: 0, kind: input, shape index: {}]
  %s1 = inlined_call_operand.vmem [shape: f32[32,64], index: 1, kind: input, shape index: {}]
  %s2 = inlined_call_operand.vmem [shape: f32[1,64], index: 2, kind: input, shape index: {}]
  %s3 = inlined_call_operand.vmem [shape: f32[64,128], index: 3, kind: input, shape index: {}]
  %s4 = inlined_call_operand.vmem [shape: f32[1,128], index: 4, kind: input, shape index: {}]
  %s5 = inlined_call_operand.vmem [shape: f32[128,16], index: 5, kind: input, shape index: {}]
  %s6 = inlined_call_operand.vmem [shape: f32[1,16], index: 6, kind: input, shape index: {}]
  %s7 = inlined_call_operand.hbm [shape: f32[8,16], index: 7, kind: output, shape index: {}]
  %s8 = sld [smem:[#allocation0]]
  $region38: #{tpu_custom_call.1} parent=0
    _
  %s10 = ssub.s32 1, %s8
  %s11 = scalar_select 0, %s10, %s8
  $region1: #{tpu_custom_call.1} parent=0
    #allocation2 [shape = 'u8[4096]{0}', space=vmem, size = 0x1000, scoped, tag = 'output window, operand 0, single buffered']
    #allocation3 [shape = 's32[1]{0}', space=sflag, size = 0x4, scoped, tag = 'scoped memory for tpu_custom_call.1']
    %12 = vsyncpa [#allocation3], 0
    // Predicated region
    $region2: #{tpu_custom_call.1} parent=1 // pred_check
      _
    $region3: #{tpu_custom_call.1} parent=1 // pred_check_branch
      %14 = sbr.rel (0) target = $region5
    $region4: #{tpu_custom_call.1} parent=1 // pred_region
      _
    $region5: #{tpu_custom_call.1} parent=1 // pred_fallthru
      _
    // Predicated region
    $region6: #{tpu_custom_call.1} parent=1 // pred_check
      _
    $region7: #{tpu_custom_call.1} parent=1 // pred_check_branch
      %16 = sbr.rel (0) target = $region9
    $region8: #{tpu_custom_call.1} parent=1 // pred_region
      _
    $region9: #{tpu_custom_call.1} parent=1 // pred_fallthru
      _
    // Predicated region
    $region10: #{tpu_custom_call.1} parent=1 // pred_check
      _
    $region11: #{tpu_custom_call.1} parent=1 // pred_check_branch
      %18 = sbr.rel (0) target = $region13
    $region12: #{tpu_custom_call.1} parent=1 // pred_region
      _
    $region13: #{tpu_custom_call.1} parent=1 // pred_fallthru
      _
    // Predicated region
    $region14: #{tpu_custom_call.1} parent=1 // pred_check
      _
    $region15: #{tpu_custom_call.1} parent=1 // pred_check_branch
      %20 = sbr.rel (0) target = $region17
    $region16: #{tpu_custom_call.1} parent=1 // pred_region
      _
    $region17: #{tpu_custom_call.1} parent=1 // pred_fallthru
      _
    // Predicated region
    $region18: #{tpu_custom_call.1} parent=1 // pred_check
      _
    $region19: #{tpu_custom_call.1} parent=1 // pred_check_branch
      %22 = sbr.rel (0) target = $region21
    $region20: #{tpu_custom_call.1} parent=1 // pred_region
      _
    $region21: #{tpu_custom_call.1} parent=1 // pred_fallthru
      _
    // Predicated region
    $region22: #{tpu_custom_call.1} parent=1 // pred_check
      _
    $region23: #{tpu_custom_call.1} parent=1 // pred_check_branch
      %24 = sbr.rel (0) target = $region25
    $region24: #{tpu_custom_call.1} parent=1 // pred_region
      _
    $region25: #{tpu_custom_call.1} parent=1 // pred_fallthru
      _
    // Predicated region
    $region26: #{tpu_custom_call.1} parent=1 // pred_check
      _
    $region27: #{tpu_custom_call.1} parent=1 // pred_check_branch
      %26 = sbr.rel (0) target = $region29
    $region28: #{tpu_custom_call.1} parent=1 // pred_region
      _
    $region29: #{tpu_custom_call.1} parent=1 // pred_fallthru
      _
    %v27 = vld [vmem:[%s0] sm:$0xff]
    %v28 = vld [vmem:[%s1] sm:$0xff]
    %v29 = vld [vmem:[%s1 + $0x8] sm:$0xff]
    %v30 = vld [vmem:[%s1 + $0x10] sm:$0xff]
    %v31 = vld [vmem:[%s1 + $0x18] sm:$0xff]
    %v32 = vld [vmem:[%s2] sm:$0x1]
    %v34 = vlaneseq
    %v35 = vshrl.u32 %v34, 7
    %v36 = vsub.s32 0, %v35
    %v37 = vrot.slane %v32, %v36
    %vm39 = vcmask 261120
    %v41 = vsel %vm39, %v27, 0
    %43 = vmatprep.subr.mxu0 0.0
    %44 = vmatpush1.msra.mxu0 %v28
    %45 = vmatprep.subr.mxu0 0.0
    %46 = vmatpush1.msra.mxu0 %v29
    %47 = vmatprep.subr.mxu0 0.0
    %48 = vmatpush1.msra.mxu0 %v30
    %49 = vmatprep.subr.mxu0 0.0
    %50 = vmatpush1.msra.mxu0 %v31
    %51 = vmatprep.subr.mxu0 0.0
    %52 = vmatpush1.msra.mxu0 0.0
    %53 = vmatprep.subr.mxu0 0.0
    %54 = vmatpush1.msra.mxu0 0.0
    %55 = vmatprep.subr.mxu0 0.0
    %56 = vmatpush1.msra.mxu0 0.0
    %57 = vmatprep.subr.mxu0 0.0
    %58 = vmatpush1.msra.mxu0 0.0
    %59 = vmatprep.subr.mxu0 0.0
    %60 = vmatpush1.msra.mxu0 0.0
    %61 = vmatprep.subr.mxu0 0.0
    %62 = vmatpush1.msra.mxu0 0.0
    %63 = vmatprep.subr.mxu0 0.0
    %64 = vmatpush1.msra.mxu0 0.0
    %65 = vmatprep.subr.mxu0 0.0
    %66 = vmatpush1.msra.mxu0 0.0
    %67 = vmatprep.subr.mxu0 0.0
    %68 = vmatpush1.msra.mxu0 0.0
    %69 = vmatprep.subr.mxu0 0.0
    %70 = vmatpush1.msra.mxu0 0.0
    %71 = vmatprep.subr.mxu0 0.0
    %72 = vmatpush1.msra.mxu0 0.0
    %73 = vmatprep.subr.mxu0 0.0
    %74 = vmatpush1.msra.mxu0 0.0
    %75 = vmatprep.subr.mxu0 0.0
    %76 = vmatpush1.msra.mxu0 0.0
    %77 = vmatprep.subr.mxu0 0.0
    %78 = vmatpush1.msra.mxu0 0.0
    %79 = vmatprep.subr.mxu0 0.0
    %80 = vmatpush1.msra.mxu0 0.0
    %81 = vmatprep.subr.mxu0 0.0
    %82 = vmatpush1.msra.mxu0 0.0
    %83 = vmatprep.subr.mxu0 0.0
    %84 = vmatpush1.msra.mxu0 0.0
    %85 = vmatprep.subr.mxu0 0.0
    %86 = vmatpush1.msra.mxu0 0.0
    %87 = vmatprep.subr.mxu0 0.0
    %88 = vmatpush1.msra.mxu0 0.0
    %89 = vmatprep.subr.mxu0 0.0
    %90 = vmatpush1.msra.mxu0 0.0
    %91 = vmatprep.subr.mxu0 0.0
    %92 = vmatpush1.msra.mxu0 0.0
    %93 = vmatprep.subr.mxu0 0.0
    %94 = vmatpush1.msra.mxu0 0.0
    %95 = vmatprep.subr.mxu0 0.0
    %96 = vmatpush1.msra.mxu0 0.0
    %97 = vmatprep.subr.mxu0 0.0
    %98 = vmatpush1.msra.mxu0 0.0
    %99 = vmatprep.subr.mxu0 0.0
    %100 = vmatpush1.msra.mxu0 0.0
    %101 = vmatprep.subr.mxu0 0.0
    %102 = vmatpush1.msra.mxu0 0.0
    %103 = vmatprep.subr.mxu0 0.0
    %104 = vmatpush1.msra.mxu0 0.0
    %105 = vmatprep.subr.mxu0 0.0
    %106 = vmatpush1.msra.mxu0 0.0
    %107 = vmatprep.mubr.f32.mxu0 0.0
    %108 = vmatmul.mubr.f32.gmra.mrb[0].mxu0 %v41
    %v109 = vpop.f32.mrb[0].mxu0
    %v110 = vadd.f32 %v37, %v109
    %v111 = vpop.f32.mrb[0].mxu0
    %112 = vdwg.mxu0
    %v113 = vmax.f32 %v110, 0.0
    %v114 = vld [vmem:[%s3] sm:$0xff]
    %v115 = vld [vmem:[%s3 + $0x8] sm:$0xff]
    %v116 = vld [vmem:[%s3 + $0x10] sm:$0xff]
    %v117 = vld [vmem:[%s3 + $0x18] sm:$0xff]
    %v118 = vld [vmem:[%s3 + $0x20] sm:$0xff]
    %v119 = vld [vmem:[%s3 + $0x28] sm:$0xff]
    %v120 = vld [vmem:[%s3 + $0x30] sm:$0xff]
    %v121 = vld [vmem:[%s3 + $0x38] sm:$0xff]
    %v122 = vld [vmem:[%s4] sm:$0x1]
    %v124 = vlaneseq
    %v125 = vshrl.u32 %v124, 7
    %v126 = vsub.s32 0, %v125
    %v127 = vrot.slane %v122, %v126
    %vm129 = vcmask 523264
    %v131 = vsel %vm129, %v113, 0
    %133 = vmatprep.subr.mxu0 0.0
    %134 = vmatpush1.msra.mxu0 %v114
    %135 = vmatprep.subr.mxu0 0.0
    %136 = vmatpush1.msra.mxu0 %v115
    %137 = vmatprep.subr.mxu0 0.0
    %138 = vmatpush1.msra.mxu0 %v116
    %139 = vmatprep.subr.mxu0 0.0
    %140 = vmatpush1.msra.mxu0 %v117
    %141 = vmatprep.subr.mxu0 0.0
    %142 = vmatpush1.msra.mxu0 %v118
    %143 = vmatprep.subr.mxu0 0.0
    %144 = vmatpush1.msra.mxu0 %v119
    %145 = vmatprep.subr.mxu0 0.0
    %146 = vmatpush1.msra.mxu0 %v120
    %147 = vmatprep.subr.mxu0 0.0
    %148 = vmatpush1.msra.mxu0 %v121
    %149 = vmatprep.subr.mxu0 0.0
    %150 = vmatpush1.msra.mxu0 0.0
    %151 = vmatprep.subr.mxu0 0.0
    %152 = vmatpush1.msra.mxu0 0.0
    %153 = vmatprep.subr.mxu0 0.0
    %154 = vmatpush1.msra.mxu0 0.0
    %155 = vmatprep.subr.mxu0 0.0
    %156 = vmatpush1.msra.mxu0 0.0
    %157 = vmatprep.subr.mxu0 0.0
    %158 = vmatpush1.msra.mxu0 0.0
    %159 = vmatprep.subr.mxu0 0.0
    %160 = vmatpush1.msra.mxu0 0.0
    %161 = vmatprep.subr.mxu0 0.0
    %162 = vmatpush1.msra.mxu0 0.0
    %163 = vmatprep.subr.mxu0 0.0
    %164 = vmatpush1.msra.mxu0 0.0
    %165 = vmatprep.subr.mxu0 0.0
    %166 = vmatpush1.msra.mxu0 0.0
    %167 = vmatprep.subr.mxu0 0.0
    %168 = vmatpush1.msra.mxu0 0.0
    %169 = vmatprep.subr.mxu0 0.0
    %170 = vmatpush1.msra.mxu0 0.0
    %171 = vmatprep.subr.mxu0 0.0
    %172 = vmatpush1.msra.mxu0 0.0
    %173 = vmatprep.subr.mxu0 0.0
    %174 = vmatpush1.msra.mxu0 0.0
    %175 = vmatprep.subr.mxu0 0.0
    %176 = vmatpush1.msra.mxu0 0.0
    %177 = vmatprep.subr.mxu0 0.0
    %178 = vmatpush1.msra.mxu0 0.0
    %179 = vmatprep.subr.mxu0 0.0
    %180 = vmatpush1.msra.mxu0 0.0
    %181 = vmatprep.subr.mxu0 0.0
    %182 = vmatpush1.msra.mxu0 0.0
    %183 = vmatprep.subr.mxu0 0.0
    %184 = vmatpush1.msra.mxu0 0.0
    %185 = vmatprep.subr.mxu0 0.0
    %186 = vmatpush1.msra.mxu0 0.0
    %187 = vmatprep.subr.mxu0 0.0
    %188 = vmatpush1.msra.mxu0 0.0
    %189 = vmatprep.subr.mxu0 0.0
    %190 = vmatpush1.msra.mxu0 0.0
    %191 = vmatprep.subr.mxu0 0.0
    %192 = vmatpush1.msra.mxu0 0.0
    %193 = vmatprep.subr.mxu0 0.0
    %194 = vmatpush1.msra.mxu0 0.0
    %195 = vmatprep.subr.mxu0 0.0
    %196 = vmatpush1.msra.mxu0 0.0
    %197 = vmatprep.mubr.f32.mxu0 0.0
    %198 = vmatmul.mubr.f32.gmra.mrb[0].mxu0 %v131
    %v199 = vpop.f32.mrb[0].mxu0
    %v200 = vadd.f32 %v127, %v199
    %v201 = vpop.f32.mrb[0].mxu0
    %202 = vdwg.mxu0
    %v203 = vmax.f32 %v200, 0.0
    %v204 = vld [vmem:[%s5] sm:$0xff]
    %v205 = vld [vmem:[%s5 + $0x8] sm:$0xff]
    %v206 = vld [vmem:[%s5 + $0x10] sm:$0xff]
    %v207 = vld [vmem:[%s5 + $0x18] sm:$0xff]
    %v208 = vld [vmem:[%s5 + $0x20] sm:$0xff]
    %v209 = vld [vmem:[%s5 + $0x28] sm:$0xff]
    %v210 = vld [vmem:[%s5 + $0x30] sm:$0xff]
    %v211 = vld [vmem:[%s5 + $0x38] sm:$0xff]
    %v212 = vld [vmem:[%s5 + $0x40] sm:$0xff]
    %v213 = vld [vmem:[%s5 + $0x48] sm:$0xff]
    %v214 = vld [vmem:[%s5 + $0x50] sm:$0xff]
    %v215 = vld [vmem:[%s5 + $0x58] sm:$0xff]
    %v216 = vld [vmem:[%s5 + $0x60] sm:$0xff]
    %v217 = vld [vmem:[%s5 + $0x68] sm:$0xff]
    %v218 = vld [vmem:[%s5 + $0x70] sm:$0xff]
    %v219 = vld [vmem:[%s5 + $0x78] sm:$0xff]
    %v220 = vld [vmem:[%s6] sm:$0x1]
    %v222 = vlaneseq
    %v223 = vshrl.u32 %v222, 7
    %v224 = vsub.s32 0, %v223
    %v225 = vrot.slane %v220, %v224
    %227 = vmatprep.subr.mxu0 0.0
    %228 = vmatpush1.msra.mxu0 %v204
    %229 = vmatprep.subr.mxu0 0.0
    %230 = vmatpush1.msra.mxu0 %v205
    %231 = vmatprep.subr.mxu0 0.0
    %232 = vmatpush1.msra.mxu0 %v206
    %233 = vmatprep.subr.mxu0 0.0
    %234 = vmatpush1.msra.mxu0 %v207
    %235 = vmatprep.subr.mxu0 0.0
    %236 = vmatpush1.msra.mxu0 %v208
    %237 = vmatprep.subr.mxu0 0.0
    %238 = vmatpush1.msra.mxu0 %v209
    %239 = vmatprep.subr.mxu0 0.0
    %240 = vmatpush1.msra.mxu0 %v210
    %241 = vmatprep.subr.mxu0 0.0
    %242 = vmatpush1.msra.mxu0 %v211
    %243 = vmatprep.subr.mxu0 0.0
    %244 = vmatpush1.msra.mxu0 %v212
    %245 = vmatprep.subr.mxu0 0.0
    %246 = vmatpush1.msra.mxu0 %v213
    %247 = vmatprep.subr.mxu0 0.0
    %248 = vmatpush1.msra.mxu0 %v214
    %249 = vmatprep.subr.mxu0 0.0
    %250 = vmatpush1.msra.mxu0 %v215
    %251 = vmatprep.subr.mxu0 0.0
    %252 = vmatpush1.msra.mxu0 %v216
    %253 = vmatprep.subr.mxu0 0.0
    %254 = vmatpush1.msra.mxu0 %v217
    %255 = vmatprep.subr.mxu0 0.0
    %256 = vmatpush1.msra.mxu0 %v218
    %257 = vmatprep.subr.mxu0 0.0
    %258 = vmatpush1.msra.mxu0 %v219
    %259 = vmatprep.subr.mxu0 0.0
    %260 = vmatpush1.msra.mxu0 0.0
    %261 = vmatprep.subr.mxu0 0.0
    %262 = vmatpush1.msra.mxu0 0.0
    %263 = vmatprep.subr.mxu0 0.0
    %264 = vmatpush1.msra.mxu0 0.0
    %265 = vmatprep.subr.mxu0 0.0
    %266 = vmatpush1.msra.mxu0 0.0
    %267 = vmatprep.subr.mxu0 0.0
    %268 = vmatpush1.msra.mxu0 0.0
    %269 = vmatprep.subr.mxu0 0.0
    %270 = vmatpush1.msra.mxu0 0.0
    %271 = vmatprep.subr.mxu0 0.0
    %272 = vmatpush1.msra.mxu0 0.0
    %273 = vmatprep.subr.mxu0 0.0
    %274 = vmatpush1.msra.mxu0 0.0
    %275 = vmatprep.subr.mxu0 0.0
    %276 = vmatpush1.msra.mxu0 0.0
    %277 = vmatprep.subr.mxu0 0.0
    %278 = vmatpush1.msra.mxu0 0.0
    %279 = vmatprep.subr.mxu0 0.0
    %280 = vmatpush1.msra.mxu0 0.0
    %281 = vmatprep.subr.mxu0 0.0
    %282 = vmatpush1.msra.mxu0 0.0
    %283 = vmatprep.subr.mxu0 0.0
    %284 = vmatpush1.msra.mxu0 0.0
    %285 = vmatprep.subr.mxu0 0.0
    %286 = vmatpush1.msra.mxu0 0.0
    %287 = vmatprep.subr.mxu0 0.0
    %288 = vmatpush1.msra.mxu0 0.0
    %289 = vmatprep.subr.mxu0 0.0
    %290 = vmatpush1.msra.mxu0 0.0
    %291 = vmatprep.mubr.f32.mxu0 0.0
    %292 = vmatmul.mubr.f32.gmra.mrb[0].mxu0 %v203
    %v293 = vpop.f32.mrb[0].mxu0
    %v294 = vadd.f32 %v225, %v293
    %v295 = vpop.f32.mrb[0].mxu0
    %296 = vdwg.mxu0
    %v297 = vtanh.pop %v294
    %vm298 = vcmask 130048
    %299 = vst.msk [vmem:[#allocation2] sm:$0xff] %vm298, %v297
    // Predicated region
    $region30: #{tpu_custom_call.1} parent=1 // pred_check
      _
    $region31: #{tpu_custom_call.1} parent=1 // pred_check_branch
      %301 = sbr.rel (0) target = $region33
    $region32: #{tpu_custom_call.1} parent=1 // pred_region
      %s303 = ssub.s32 128, 128
      %304 = vsyncadd [#allocation3], %s303
      %s306 = sshll.u32 [#allocation2], 4
      %s307 = int_to_ptr.vmem [resolvable:$true] %s306
      %309 = dma.vmem_to_hbm [thread:$0]  %s307, 128, %s7, [#allocation3]
    $region33: #{tpu_custom_call.1} parent=1 // pred_fallthru
      _
    // Predicated region
    $region34: #{tpu_custom_call.1} parent=1 // pred_check
      _
    $region35: #{tpu_custom_call.1} parent=1 // pred_check_branch
      %311 = sbr.rel (0) target = $region37
    $region36: #{tpu_custom_call.1} parent=1 // pred_region
      %312 = dma.done [#allocation3], 128
    $region37: #{tpu_custom_call.1} parent=1 // pred_fallthru
      _
    %313 = vsyncpa [#allocation3], 1

</llo_original>
